<compile_context>
chip_gen: v7x
topology: tpu7x:2x2x1
jax: 0.10.0
libtpu: 0.0.40
codegen_flags: <defaults>
</compile_context>

<pallas_src>
import functools
import math

import jax
import jax.numpy as jnp
from jax.experimental import pallas as pl
from jax.experimental.pallas import tpu as pltpu


def _cdiv(a: int, b: int) -> int:
    return -(-a // b)


def _round_up(a: int, b: int) -> int:
    return _cdiv(a, b) * b


def _lcm(a: int, b: int) -> int:
    return a // math.gcd(a, b) * b


def _chip_info():
    """Returns (tensorcores_per_device, is_v7x). Conservative fallback: (1, False)."""
    try:
        kind = jax.devices()[0].device_kind.lower()
    except Exception:  # pragma: no cover
        return 1, False
    if "v7" in kind:
        return 2, True
    # v4 / v5p expose a fused megacore (2 TensorCores) per device.
    if "v4" in kind or ("v5" in kind and "lite" not in kind and "v5e" not in kind):
        return 2, False
    return 1, False


# ---------------------------------------------------------------------------
# Kernels
# ---------------------------------------------------------------------------

def _eikonal_packed_kernel(sel_ref, x_ref, out_ref, acc_ref, *,
                           steps, tr, r_valid, precise, needs_mask):
    """D < 128 path. Grid = (partials, steps). x block is (tr, lane_w) lane-dense."""
    p = pl.program_id(0)
    k = pl.program_id(1)

    @pl.when(k == 0)
    def _init():
        acc_ref[...] = jnp.zeros_like(acc_ref)

    x = x_ref[...].astype(jnp.float32)                 # (tr, lane_w)
    x2 = x * x
    # hi/lo bf16 split keeps the 0/1-selector matmul ~f32 accurate on the MXU
    # regardless of default matmul precision; fused into ONE dot with K=2*lane_w.
    hi = x2.astype(jnp.bfloat16)
    if precise:
        lo = (x2 - hi.astype(jnp.float32)).astype(jnp.bfloat16)
        operand = jnp.concatenate([hi, lo], axis=-1)   # (tr, 2*lane_w) bf16
    else:
        operand = hi                                   # reduced-precision fast path
    sq = jnp.dot(operand, sel_ref[...],
                 preferred_element_type=jnp.float32)   # (tr, G) = per-row sum(x^2)
    diff = jnp.sqrt(sq) - 1.0
    dd = diff * diff
    if needs_mask:
        # Rows beyond the valid packed-row count (block padding) contribute 0.
        start = (p * steps + k) * tr
        rows = jax.lax.broadcasted_iota(jnp.int32, dd.shape, 0)
        dd = jnp.where(rows < (r_valid - start), dd, 0.0)
    # Per-step fold to a single-vreg accumulator: no (tr, G) RMW traffic.
    acc_ref[...] += jnp.sum(dd, axis=0, keepdims=True)

    @pl.when(k == pl.num_programs(1) - 1)
    def _finalize():
        out_ref[...] = jnp.sum(acc_ref[...]).reshape(1, 1, 1)


def _eikonal_wide_kernel(x_ref, out_ref, acc_ref, *,
                         steps, tr, r_valid, needs_mask):
    """D >= 128 path: exact f32 lane reduce, no selector matmul, no hi/lo split."""
    p = pl.program_id(0)
    k = pl.program_id(1)

    @pl.when(k == 0)
    def _init():
        acc_ref[...] = jnp.zeros_like(acc_ref)

    x = x_ref[...].astype(jnp.float32)                 # (tr, D)
    sq = jnp.sum(x * x, axis=-1, keepdims=True)        # (tr, 1)
    diff = jnp.sqrt(sq) - 1.0
    dd = diff * diff
    if needs_mask:
        start = (p * steps + k) * tr
        rows = jax.lax.broadcasted_iota(jnp.int32, dd.shape, 0)
        dd = jnp.where(rows < (r_valid - start), dd, 0.0)
    acc_ref[...] += jnp.sum(dd, axis=0, keepdims=True)

    @pl.when(k == pl.num_programs(1) - 1)
    def _finalize():
        out_ref[...] = jnp.sum(acc_ref[...]).reshape(1, 1, 1)


# ---------------------------------------------------------------------------
# Wrapper
# ---------------------------------------------------------------------------

def eikonal_loss(coord, intensity, out, target, *, loss_weight=1.0,
                 reduction: str = "mean", precise: bool = True,
                 tile_f32_bytes: int | None = None):
    """Pallas TPU implementation of EikonalLoss.forward (loss_weight intentionally
    unused, exactly like the PyTorch reference forward)."""
    del coord, intensity, target, loss_weight
    assert out.ndim == 2
    if reduction not in ("mean", "sum"):
        # TODO(synk): reduction='none' (per-row losses) not wired up.
        raise NotImplementedError(f"reduction={reduction!r} not supported")
    n, d = out.shape
    assert n >= 1 and d >= 1

    cores, is_v7 = _chip_info()
    if tile_f32_bytes is None:
        tile_f32_bytes = (6 if is_v7 else 8) << 20     # f32-equivalent block budget
    vmem_limit = (48 if is_v7 else 64) << 20
    itemsize = jnp.dtype(out.dtype).itemsize

    use_mxu = d < 128
    if use_mxu:
        lane_w = _lcm(d, 128)       # free-bitcast lane width (e.g. D=3 -> 384)
        g = lane_w // d             # original rows per packed lane row
        n_main = (n // g) * g
    else:
        lane_w = d                  # block last dim == full D (no HBM padding)
        g = 1
        n_main = n

    # Ragged row tail (< g <= 128 rows): tiny plain-jnp reduction.
    tail = n - n_main
    if tail:
        xt = out[n_main:].astype(jnp.float32)
        tail_sum = jnp.sum((jnp.sqrt(jnp.sum(xt * xt, axis=1)) - 1.0) ** 2)
    else:
        tail_sum = jnp.float32(0.0)

    if n_main == 0:
        total = tail_sum
    else:
        if use_mxu:
            # TODO(synk): when N % g != 0 the prefix slice still costs one copy of
            # the main part; aligned N (the common case) is fully copy-free.
            x = out if n_main == n else out[:n_main]
            x = x.reshape(n_main // g, lane_w)          # free bitcast reshape
        else:
            x = out
        r = x.shape[0]

        num_partials = cores if (cores > 1 and r >= 128) else 1
        tr_target = max(8, ((tile_f32_bytes // 4) // lane_w) // 8 * 8)
        per_part = _cdiv(r, num_partials)
        tr = min(tr_target, _round_up(per_part, 8))
        if num_partials == 1 and tr > r:
            tr = r                                      # full-dim block (any r)
        steps = _cdiv(per_part, tr)
        needs_mask = (num_partials * steps * tr) != r   # static: mask only if padded

        if use_mxu:
            k_dim = 2 * lane_w if precise else lane_w
            col = jnp.arange(k_dim) % lane_w
            # lane -> packed-row selector, stacked for the fused hi/lo dot; 0/1 is
            # exact in bf16 and stays resident in VMEM (constant block index).
            sel = (col[:, None] // d == jnp.arange(g)[None, :]).astype(jnp.bfloat16)
            in_specs = [
                pl.BlockSpec((k_dim, g), lambda p, k: (0, 0)),
                pl.BlockSpec((tr, lane_w), lambda p, k, s=steps: (p * s + k, 0)),
            ]
            call_args = (sel, x)
            kernel_fn = functools.partial(
                _eikonal_packed_kernel, steps=steps, tr=tr, r_valid=r,
                precise=precise, needs_mask=needs_mask)
            flops = 2 * r * k_dim * g + 10 * r * lane_w
            trans = r * g
            bytes_acc = r * lane_w * itemsize + k_dim * g * 2 + num_partials * 4
            acc_cols = g
        else:
            in_specs = [
                pl.BlockSpec((tr, lane_w), lambda p, k, s=steps: (p * s + k, 0)),
            ]
            call_args = (x,)
            kernel_fn = functools.partial(
                _eikonal_wide_kernel, steps=steps, tr=tr, r_valid=r,
                needs_mask=needs_mask)
            flops = 4 * r * lane_w
            trans = r
            bytes_acc = r * lane_w * itemsize + num_partials * 4
            acc_cols = 1

        cost = pl.CostEstimate(flops=int(flops), transcendentals=int(trans),
                               bytes_accessed=int(bytes_acc))

        def _call(lead_sem):
            return pl.pallas_call(
                kernel_fn,
                out_shape=jax.ShapeDtypeStruct((num_partials, 1, 1), jnp.float32),
                grid_spec=pltpu.PrefetchScalarGridSpec(
                    num_scalar_prefetch=0,
                    grid=(num_partials, steps),
                    in_specs=in_specs,
                    out_specs=pl.BlockSpec((1, 1, 1), lambda p, k: (p, 0, 0)),
                    scratch_shapes=[pltpu.VMEM((1, acc_cols), jnp.float32)],
                ),
                compiler_params=pltpu.CompilerParams(
                    dimension_semantics=(lead_sem, pltpu.ARBITRARY),
                    vmem_limit_bytes=vmem_limit,
                ),
                cost_estimate=cost,
            )(*call_args)

        if num_partials > 1:
            # v7x: ask for true per-TensorCore sharding first, fall back to the
            # plain megacore "parallel" semantics if the backend rejects it.
            sems = [pltpu.CORE_PARALLEL, pltpu.PARALLEL] if is_v7 else [pltpu.PARALLEL]
        else:
            sems = [pltpu.ARBITRARY]
        partials = None
        for idx, sem in enumerate(sems):
            try:
                partials = _call(sem)
                break
            except Exception:
                if idx == len(sems) - 1:
                    raise
        total = jnp.sum(partials) + tail_sum

    if reduction == "mean":
        total = total / n
    return total


def _reference(out):
    pred_norm = jnp.linalg.norm(out.astype(jnp.float32), ord=2, axis=1)
    return jnp.mean((pred_norm - 1.0) ** 2)


if __name__ == "__main__":
    key = jax.random.PRNGKey(0)
    ks = jax.random.split(key, 6)

    def check(out, rtol=2e-5, atol=1e-5, **kw):
        n_rows = out.shape[0]
        coord = jnp.zeros((n_rows, 3), jnp.float32)
        intensity = jnp.zeros((n_rows, 1), jnp.float32)
        target = jnp.zeros((n_rows, 1), jnp.float32)
        got = jax.block_until_ready(
            eikonal_loss(coord, intensity, out, target, **kw))
        ref = _reference(out)
        assert jnp.allclose(got, ref, rtol=rtol, atol=atol), (kw, got, ref)

    # Canonical Eikonal case (SDF gradients): D=3, aligned N -> fully copy-free.
    check(jax.random.normal(ks[0], (256, 3), jnp.float32))
    # Ragged N: kernel main part + tiny jnp tail.
    check(jax.random.normal(ks[1], (300, 3), jnp.float32))
    # Multi-step grid + in-kernel row mask (tiny tiles forced for coverage).
    check(jax.random.normal(ks[2], (4000, 3), jnp.float32), tile_f32_bytes=16384)
    # D dividing 128 (G=4 lane packing).
    check(jax.random.normal(ks[3], (128, 32), jnp.float32))
    # Wide-D path (exact f32 lane reduce), bf16 input.
    check(jax.random.normal(ks[4], (64, 200), jnp.bfloat16))
    # Reduced-precision fast path (single bf16 matmul), looser tolerance.
    check(jax.random.normal(ks[5], (256, 3), jnp.float32),
          rtol=2e-2, atol=1e-3, precise=False)

    print("KERNEL_OK")
</pallas_src>

<mosaic_0001>
module attributes {stable_mosaic.version = 11 : i64} {
  func.func @_eikonal_packed_kernel(%arg0: i32, %arg1: i32, %arg2: memref<768x128xbf16, #tpu.memory_space<vmem>>, %arg3: memref<2x384xf32, #tpu.memory_space<vmem>>, %arg4: memref<1x1x1xf32, #tpu.memory_space<vmem>>, %arg5: memref<1x128xf32, #tpu.memory_space<vmem>>) attributes {dimension_semantics = [#tpu.dimension_semantics<arbitrary>, #tpu.dimension_semantics<arbitrary>], iteration_bounds = array<i64: 1, 1>, scalar_prefetch = 0 : i64, scratch_operands = 1 : i64, tpu.core_type = #tpu.core_type<tc>, window_params = [{pipeline_mode = #tpu.pipeline_mode<synchronous>, transform_indices = @transform_0, window_bounds = array<i64: 768, 128>}, {transform_indices = @transform_1, window_bounds = array<i64: 2, 384>}, {transform_indices = @transform_2, window_bounds = array<i64: 1, 1, 1>}]} {
    %c0_i32 = arith.constant 0 : i32
    %0 = arith.cmpi eq, %arg1, %c0_i32 : i32
    %1 = arith.extui %0 : i1 to i32
    %c0_i32_0 = arith.constant 0 : i32
    %2 = arith.cmpi ne, %1, %c0_i32_0 : i32
    scf.if %2 {
      %cst_12 = arith.constant 0.000000e+00 : f32
      %24 = vector.broadcast %cst_12 : f32 to vector<1x128xf32>
      %c0_13 = arith.constant 0 : index
      %c0_14 = arith.constant 0 : index
      %25 = vector.load %arg5[%c0_13, %c0_14] : memref<1x128xf32, #tpu.memory_space<vmem>>, vector<1x128xf32>
      tpu.vector_store %arg5[%c0_13, %c0_14], %24 {strides = array<i32>} : memref<1x128xf32, #tpu.memory_space<vmem>>, vector<1x128xf32>,
    } else {
    }
    %c0 = arith.constant 0 : index
    %c0_1 = arith.constant 0 : index
    %3 = vector.load %arg3[%c0, %c0_1] : memref<2x384xf32, #tpu.memory_space<vmem>>, vector<2x384xf32>
    %4 = arith.mulf %3, %3 : vector<2x384xf32>
    %5 = arith.truncf %4 : vector<2x384xf32> to vector<2x384xbf16>
    %6 = arith.extf %5 : vector<2x384xbf16> to vector<2x384xf32>
    %7 = arith.subf %4, %6 : vector<2x384xf32>
    %8 = arith.truncf %7 : vector<2x384xf32> to vector<2x384xbf16>
    %9 = tpu.concatenate %5, %8 in 1 : vector<2x384xbf16>, vector<2x384xbf16> -> vector<2x768xbf16>
    %c0_2 = arith.constant 0 : index
    %c0_3 = arith.constant 0 : index
    %10 = vector.load %arg2[%c0_2, %c0_3] : memref<768x128xbf16, #tpu.memory_space<vmem>>, vector<768x128xbf16>
    %cst = arith.constant dense<0.000000e+00> : vector<2x128xf32>
    %11 = tpu.matmul %9, %10, %cst {dimension_numbers = #tpu.dot_dimension_numbers<[1], [0], [0], [1], [0, 0, 1, 1], [], []>} : vector<2x768xbf16>, vector<768x128xbf16>, vector<2x128xf32> -> vector<2x128xf32>
    %12 = math.sqrt %11 : vector<2x128xf32>
    %cst_4 = arith.constant 1.000000e+00 : f32
    %13 = vector.broadcast %cst_4 : f32 to vector<2x128xf32>
    %14 = arith.subf %12, %13 : vector<2x128xf32>
    %15 = arith.mulf %14, %14 : vector<2x128xf32>
    %c0_5 = arith.constant 0 : index
    %c0_6 = arith.constant 0 : index
    %16 = vector.load %arg5[%c0_5, %c0_6] : memref<1x128xf32, #tpu.memory_space<vmem>>, vector<1x128xf32>
    %cst_7 = arith.constant dense<0.000000e+00> : vector<128xf32>
    %17 = vector.multi_reduction <add>, %15, %cst_7 [0] : vector<2x128xf32> to vector<128xf32>
    %18 = vector.shape_cast %17 : vector<128xf32> to vector<1x128xf32>
    %19 = arith.addf %16, %18 : vector<1x128xf32>
    %c0_8 = arith.constant 0 : index
    %c0_9 = arith.constant 0 : index
    %20 = vector.load %arg5[%c0_8, %c0_9] : memref<1x128xf32, #tpu.memory_space<vmem>>, vector<1x128xf32>
    tpu.vector_store %arg5[%c0_8, %c0_9], %19 {strides = array<i32>} : memref<1x128xf32, #tpu.memory_space<vmem>>, vector<1x128xf32>,
    %c0_i32_10 = arith.constant 0 : i32
    %21 = arith.cmpi eq, %arg1, %c0_i32_10 : i32
    %22 = arith.extui %21 : i1 to i32
    %c0_i32_11 = arith.constant 0 : i32
    %23 = arith.cmpi ne, %22, %c0_i32_11 : i32
    scf.if %23 {
      %c0_12 = arith.constant 0 : index
      %c0_13 = arith.constant 0 : index
      %24 = vector.load %arg5[%c0_12, %c0_13] : memref<1x128xf32, #tpu.memory_space<vmem>>, vector<1x128xf32>
      %25 = vector.shape_cast %24 : vector<1x128xf32> to vector<1x1x128xf32>
      %cst_14 = arith.constant dense<0.000000e+00> : vector<1xf32>
      %26 = vector.multi_reduction <add>, %25, %cst_14 [1, 2] : vector<1x1x128xf32> to vector<1xf32>
      %27 = vector.shape_cast %26 : vector<1xf32> to vector<1x1x1xf32>
      %28 = vector.extract %27[0, 0, 0] : f32 from vector<1x1x1xf32>
      %29 = vector.broadcast %28 : f32 to vector<1x1x1xf32>
      %c0_15 = arith.constant 0 : index
      %c0_16 = arith.constant 0 : index
      %c0_17 = arith.constant 0 : index
      %30 = vector.load %arg4[%c0_15, %c0_16, %c0_17] : memref<1x1x1xf32, #tpu.memory_space<vmem>>, vector<1x1x1xf32>
      tpu.vector_store %arg4[%c0_15, %c0_16, %c0_17], %29 {strides = array<i32>} : memref<1x1x1xf32, #tpu.memory_space<vmem>>, vector<1x1x1xf32>,
    } else {
    }
    return
  }
  func.func @transform_0(%arg0: i32, %arg1: i32) -> (i32, i32) {
    %c0_i32 = arith.constant 0 : i32
    %c0_i32_0 = arith.constant 0 : i32
    %c0_i32_1 = arith.constant 0 : i32
    return %c0_i32, %c0_i32_0 : i32, i32
  }
  func.func @transform_1(%arg0: i32, %arg1: i32) -> (i32, i32) {
    %c1_i32 = arith.constant 1 : i32
    %0 = arith.muli %arg0, %c1_i32 : i32
    %1 = arith.addi %0, %arg1 : i32
    %c0_i32 = arith.constant 0 : i32
    %c0_i32_0 = arith.constant 0 : i32
    return %1, %c0_i32 : i32, i32
  }
  func.func @transform_2(%arg0: i32, %arg1: i32) -> (i32, i32, i32) {
    %c0_i32 = arith.constant 0 : i32
    %c0_i32_0 = arith.constant 0 : i32
    %c0_i32_1 = arith.constant 0 : i32
    return %arg0, %c0_i32, %c0_i32_0 : i32, i32, i32
  }
}

</mosaic_0001>

<llo_original>
// kernel: tpu_custom_call.1
$region0: #{tpu_custom_call.1}
  #allocation0 [shape = 'u32[]', space=smem, size = 0x4, offset = 0x4, fixed_abs, tag = 'smem constant byte address 0x4 - core index']
  #allocation1 [shape = 'u32[144,128]{1,0:T(1,128)}', space=vmem, size = 0x12000, scoped, tag = 'internal scratch']
  #allocation2 [shape = 'f32[1,128]{1,0:T(1,128)}', space=vmem, size = 0x200, scoped, tag = 'scratch operand']
  %s0 = inlined_call_operand.hbm [shape: bf16[768,128], index: 0, kind: input, shape index: {}]
  %s1 = inlined_call_operand.hbm [shape: f32[2,384], index: 1, kind: input, shape index: {}]
  %s2 = inlined_call_operand.hbm [shape: f32[1,1,1], index: 2, kind: output, shape index: {}]
  %s3 = sld [smem:[#allocation0]]
  $region34: #{tpu_custom_call.1} parent=0
    _
  %s5 = ssub.s32 1, %s3
  %s6 = scalar_select 0, %s5, %s3
  $region1: #{tpu_custom_call.1} parent=0
    #allocation3 [shape = 'u8[196608]{0}', space=vmem, size = 0x30000, scoped, tag = 'input window, operand 0, single buffered']
    #allocation4 [shape = 's32[1]{0}', space=sflag, size = 0x4, scoped, tag = 'scoped memory for tpu_custom_call.1']
    #allocation5 [shape = 's32[1]{0}', space=sflag, size = 0x4, scoped, tag = 'scoped memory for tpu_custom_call.1']
    #allocation6 [shape = 'u8[3072]{0}', space=vmem, size = 0xc00, scoped, tag = 'input window, operand 1, single buffered']
    #allocation7 [shape = 's32[1]{0}', space=sflag, size = 0x4, scoped, tag = 'scoped memory for tpu_custom_call.1']
    #allocation8 [shape = 'u8[512]{0}', space=vmem, size = 0x400, scoped, tag = 'output window, operand 0, single buffered']
    %7 = vsyncpa [#allocation4], 0
    %8 = vsyncpa [#allocation7], 0
    %9 = vsyncpa [#allocation5], 0
    // Predicated region
    $region2: #{tpu_custom_call.1} parent=1 // pred_check
      _
    $region3: #{tpu_custom_call.1} parent=1 // pred_check_branch
      %11 = sbr.rel (0) target = $region5
    $region4: #{tpu_custom_call.1} parent=1 // pred_region
      %s13 = ssub.s32 6144, 6144
      %14 = vsyncadd [#allocation4], %s13
      %s15 = sshll.u32 [#allocation3], 4
      %s16 = int_to_ptr.vmem [resolvable:$true] %s15
      %21 = dma.hbm_to_vmem [thread:$0]  %s0, 6144, %s16, [#allocation4], 64, 64, 4
    $region5: #{tpu_custom_call.1} parent=1 // pred_fallthru
      _
    // Predicated region
    $region6: #{tpu_custom_call.1} parent=1 // pred_check
      _
    $region7: #{tpu_custom_call.1} parent=1 // pred_check_branch
      %23 = sbr.rel (0) target = $region9
    $region8: #{tpu_custom_call.1} parent=1 // pred_region
      %s24 = sadd.s32 0, 0
      %s26 = ssub.s32 96, 96
      %27 = vsyncadd [#allocation7], %s26
      %s28 = smul.addr %s24, 3
      %s29 = smul.addr %s28, 32
      %s30 = scalar_lea.hbm %s1, %s29
      %s32 = sshll.u32 [#allocation6], 4
      %s33 = int_to_ptr.vmem [resolvable:$true] %s32
      %35 = dma.hbm_to_vmem [thread:$0]  %s30, 96, %s33, [#allocation7]
    $region9: #{tpu_custom_call.1} parent=1 // pred_fallthru
      _
    // Predicated region
    $region10: #{tpu_custom_call.1} parent=1 // pred_check
      _
    $region11: #{tpu_custom_call.1} parent=1 // pred_check_branch
      %37 = sbr.rel (0) target = $region13
    $region12: #{tpu_custom_call.1} parent=1 // pred_region
      %38 = dma.done [#allocation4], 6144
    $region13: #{tpu_custom_call.1} parent=1 // pred_fallthru
      _
    // Predicated region
    $region14: #{tpu_custom_call.1} parent=1 // pred_check
      _
    $region15: #{tpu_custom_call.1} parent=1 // pred_check_branch
      %40 = sbr.rel (0) target = $region17
    $region16: #{tpu_custom_call.1} parent=1 // pred_region
      %41 = dma.done [#allocation7], 96
    $region17: #{tpu_custom_call.1} parent=1 // pred_fallthru
      _
    %s42 = sadd.s32 0, 0
    %p44 = scmp.eq.s32.totalorder 0, 0
    // Predicated region
    $region18: #{tpu_custom_call.1} parent=1 // pred_check
      %p45 = pneg %p44
    $region19: #{tpu_custom_call.1} parent=1 // pred_check_branch
      %47 = sbr.rel (%p45) target = $region21
    $region20: #{tpu_custom_call.1} parent=1 // pred_region
      %48 = vst [vmem:[#allocation2] sm:$0x1] 0.0
    $region21: #{tpu_custom_call.1} parent=1 // pred_fallthru
      _
    %v49 = vld [vmem:[#allocation6] sm:$0x3f]
    %v50 = vmul.f32 %v49, %v49
    %v52 = vcombine.high %v50, %v50
    %v54 = vunpack.c.l.s4 1983009808
    %v55 = vunpack.c.0.s8 %v54
    %v56 = vlaneseq
    %v57 = vshrl.u32 %v56, 7
    %v58 = vsub.s32 %v55, %v57
    %v59 = vrot.slane %v50, %v58
    %v61 = vunpack.c.l.s4 1983009808
    %v62 = vunpack.c.0.s8 %v61
    %v63 = vlaneseq
    %v64 = vshrl.u32 %v63, 7
    %v65 = vsub.s32 %v62, %v64
    %v66 = vrot.slane %v52, %v65
    %v67 = vcombine.high %v59, %v59
    %v71 = vpack.c.bf16 %v59, %v59
    %v72 = vpack.c.bf16 %v67, %v67
    %v73 = vpack.c.bf16 %v66, %v66
    %v74 = vunpack.c.l.bf16 %v71
    %v75 = vunpack.c.l.bf16 %v72
    %v76 = vunpack.c.l.bf16 %v73
    %v80 = vcombine.low %v74, %v75
    %v82 = vunpack.c.l.s4 1983009808
    %v83 = vunpack.c.0.s8 %v82
    %v84 = vlaneseq
    %v85 = vshrl.u32 %v84, 7
    %v86 = vsub.s32 %v83, %v85
    %v87 = vrot.slane %v80, %v86
    %v89 = vunpack.c.l.s4 1983009808
    %v90 = vunpack.c.0.s8 %v89
    %v91 = vlaneseq
    %v92 = vshrl.u32 %v91, 7
    %v93 = vsub.s32 %v90, %v92
    %v94 = vrot.slane %v76, %v93
    %v95 = vcombine.low %v87, %v94
    %v97 = vsub.f32 %v50, %v95
    %v99 = vcombine.high %v97, %v97
    %v101 = vunpack.c.l.s4 1983009808
    %v102 = vunpack.c.0.s8 %v101
    %v103 = vlaneseq
    %v104 = vshrl.u32 %v103, 7
    %v105 = vsub.s32 %v102, %v104
    %v106 = vrot.slane %v97, %v105
    %v108 = vunpack.c.l.s4 1983009808
    %v109 = vunpack.c.0.s8 %v108
    %v110 = vlaneseq
    %v111 = vshrl.u32 %v110, 7
    %v112 = vsub.s32 %v109, %v111
    %v113 = vrot.slane %v99, %v112
    %v114 = vcombine.high %v106, %v106
    %v118 = vpack.c.bf16 %v106, %v106
    %v119 = vpack.c.bf16 %v114, %v114
    %v120 = vpack.c.bf16 %v113, %v113
    %v121 = vld [vmem:[#allocation3] sm:$0xf]
    %v122 = vld [vmem:[#allocation3 + $0x4] sm:$0xf]
    %v123 = vld [vmem:[#allocation3 + $0x8] sm:$0xf]
    %v124 = vld [vmem:[#allocation3 + $0xc] sm:$0xf]
    %v125 = vld [vmem:[#allocation3 + $0x10] sm:$0xf]
    %v126 = vld [vmem:[#allocation3 + $0x14] sm:$0xf]
    %v127 = vld [vmem:[#allocation3 + $0x18] sm:$0xf]
    %v128 = vld [vmem:[#allocation3 + $0x1c] sm:$0xf]
    %v129 = vld [vmem:[#allocation3 + $0x20] sm:$0xf]
    %v130 = vld [vmem:[#allocation3 + $0x24] sm:$0xf]
    %v131 = vld [vmem:[#allocation3 + $0x28] sm:$0xf]
    %v132 = vld [vmem:[#allocation3 + $0x2c] sm:$0xf]
    %v133 = vld [vmem:[#allocation3 + $0x30] sm:$0xf]
    %v134 = vld [vmem:[#allocation3 + $0x34] sm:$0xf]
    %v135 = vld [vmem:[#allocation3 + $0x38] sm:$0xf]
    %v136 = vld [vmem:[#allocation3 + $0x3c] sm:$0xf]
    %v137 = vld [vmem:[#allocation3 + $0x40] sm:$0xf]
    %v138 = vld [vmem:[#allocation3 + $0x44] sm:$0xf]
    %v139 = vld [vmem:[#allocation3 + $0x48] sm:$0xf]
    %v140 = vld [vmem:[#allocation3 + $0x4c] sm:$0xf]
    %v141 = vld [vmem:[#allocation3 + $0x50] sm:$0xf]
    %v142 = vld [vmem:[#allocation3 + $0x54] sm:$0xf]
    %v143 = vld [vmem:[#allocation3 + $0x58] sm:$0xf]
    %v144 = vld [vmem:[#allocation3 + $0x5c] sm:$0xf]
    %v145 = vld [vmem:[#allocation3 + $0x60] sm:$0xf]
    %v146 = vld [vmem:[#allocation3 + $0x64] sm:$0xf]
    %v147 = vld [vmem:[#allocation3 + $0x68] sm:$0xf]
    %v148 = vld [vmem:[#allocation3 + $0x6c] sm:$0xf]
    %v149 = vld [vmem:[#allocation3 + $0x70] sm:$0xf]
    %v150 = vld [vmem:[#allocation3 + $0x74] sm:$0xf]
    %v151 = vld [vmem:[#allocation3 + $0x78] sm:$0xf]
    %v152 = vld [vmem:[#allocation3 + $0x7c] sm:$0xf]
    %v153 = vld [vmem:[#allocation3 + $0x80] sm:$0xf]
    %v154 = vld [vmem:[#allocation3 + $0x84] sm:$0xf]
    %v155 = vld [vmem:[#allocation3 + $0x88] sm:$0xf]
    %v156 = vld [vmem:[#allocation3 + $0x8c] sm:$0xf]
    %v157 = vld [vmem:[#allocation3 + $0x90] sm:$0xf]
    %v158 = vld [vmem:[#allocation3 + $0x94] sm:$0xf]
    %v159 = vld [vmem:[#allocation3 + $0x98] sm:$0xf]
    %v160 = vld [vmem:[#allocation3 + $0x9c] sm:$0xf]
    %v161 = vld [vmem:[#allocation3 + $0xa0] sm:$0xf]
    %v162 = vld [vmem:[#allocation3 + $0xa4] sm:$0xf]
    %v163 = vld [vmem:[#allocation3 + $0xa8] sm:$0xf]
    %v164 = vld [vmem:[#allocation3 + $0xac] sm:$0xf]
    %v165 = vld [vmem:[#allocation3 + $0xb0] sm:$0xf]
    %v166 = vld [vmem:[#allocation3 + $0xb4] sm:$0xf]
    %v167 = vld [vmem:[#allocation3 + $0xb8] sm:$0xf]
    %v168 = vld [vmem:[#allocation3 + $0xbc] sm:$0xf]
    %v169 = vld [vmem:[#allocation3 + $0xc0] sm:$0xf]
    %v170 = vld [vmem:[#allocation3 + $0xc4] sm:$0xf]
    %v171 = vld [vmem:[#allocation3 + $0xc8] sm:$0xf]
    %v172 = vld [vmem:[#allocation3 + $0xcc] sm:$0xf]
    %v173 = vld [vmem:[#allocation3 + $0xd0] sm:$0xf]
    %v174 = vld [vmem:[#allocation3 + $0xd4] sm:$0xf]
    %v175 = vld [vmem:[#allocation3 + $0xd8] sm:$0xf]
    %v176 = vld [vmem:[#allocation3 + $0xdc] sm:$0xf]
    %v177 = vld [vmem:[#allocation3 + $0xe0] sm:$0xf]
    %v178 = vld [vmem:[#allocation3 + $0xe4] sm:$0xf]
    %v179 = vld [vmem:[#allocation3 + $0xe8] sm:$0xf]
    %v180 = vld [vmem:[#allocation3 + $0xec] sm:$0xf]
    %v181 = vld [vmem:[#allocation3 + $0xf0] sm:$0xf]
    %v182 = vld [vmem:[#allocation3 + $0xf4] sm:$0xf]
    %v183 = vld [vmem:[#allocation3 + $0xf8] sm:$0xf]
    %v184 = vld [vmem:[#allocation3 + $0xfc] sm:$0xf]
    %v185 = vld [vmem:[#allocation3 + $0x100] sm:$0xf]
    %v186 = vld [vmem:[#allocation3 + $0x104] sm:$0xf]
    %v187 = vld [vmem:[#allocation3 + $0x108] sm:$0xf]
    %v188 = vld [vmem:[#allocation3 + $0x10c] sm:$0xf]
    %v189 = vld [vmem:[#allocation3 + $0x110] sm:$0xf]
    %v190 = vld [vmem:[#allocation3 + $0x114] sm:$0xf]
    %v191 = vld [vmem:[#allocation3 + $0x118] sm:$0xf]
    %v192 = vld [vmem:[#allocation3 + $0x11c] sm:$0xf]
    %v193 = vld [vmem:[#allocation3 + $0x120] sm:$0xf]
    %v194 = vld [vmem:[#allocation3 + $0x124] sm:$0xf]
    %v195 = vld [vmem:[#allocation3 + $0x128] sm:$0xf]
    %v196 = vld [vmem:[#allocation3 + $0x12c] sm:$0xf]
    %v197 = vld [vmem:[#allocation3 + $0x130] sm:$0xf]
    %v198 = vld [vmem:[#allocation3 + $0x134] sm:$0xf]
    %v199 = vld [vmem:[#allocation3 + $0x138] sm:$0xf]
    %v200 = vld [vmem:[#allocation3 + $0x13c] sm:$0xf]
    %v201 = vld [vmem:[#allocation3 + $0x140] sm:$0xf]
    %v202 = vld [vmem:[#allocation3 + $0x144] sm:$0xf]
    %v203 = vld [vmem:[#allocation3 + $0x148] sm:$0xf]
    %v204 = vld [vmem:[#allocation3 + $0x14c] sm:$0xf]
    %v205 = vld [vmem:[#allocation3 + $0x150] sm:$0xf]
    %v206 = vld [vmem:[#allocation3 + $0x154] sm:$0xf]
    %v207 = vld [vmem:[#allocation3 + $0x158] sm:$0xf]
    %v208 = vld [vmem:[#allocation3 + $0x15c] sm:$0xf]
    %v209 = vld [vmem:[#allocation3 + $0x160] sm:$0xf]
    %v210 = vld [vmem:[#allocation3 + $0x164] sm:$0xf]
    %v211 = vld [vmem:[#allocation3 + $0x168] sm:$0xf]
    %v212 = vld [vmem:[#allocation3 + $0x16c] sm:$0xf]
    %v213 = vld [vmem:[#allocation3 + $0x170] sm:$0xf]
    %v214 = vld [vmem:[#allocation3 + $0x174] sm:$0xf]
    %v215 = vld [vmem:[#allocation3 + $0x178] sm:$0xf]
    %v216 = vld [vmem:[#allocation3 + $0x17c] sm:$0xf]
    %v313 = vunpack.c.l.b16 %v121
    %v314 = vunpack.c.l.b16 %v122
    %v315 = vunpack.c.l.b16 %v123
    %v316 = vunpack.c.l.b16 %v124
    %v317 = vunpack.c.l.b16 %v125
    %v318 = vunpack.c.l.b16 %v126
    %v319 = vunpack.c.l.b16 %v127
    %v320 = vunpack.c.l.b16 %v128
    %v321 = vunpack.c.l.b16 %v129
    %v322 = vunpack.c.l.b16 %v130
    %v323 = vunpack.c.l.b16 %v131
    %v324 = vunpack.c.l.b16 %v132
    %v325 = vunpack.c.l.b16 %v133
    %v326 = vunpack.c.l.b16 %v134
    %v327 = vunpack.c.l.b16 %v135
    %v328 = vunpack.c.l.b16 %v136
    %v329 = vunpack.c.l.b16 %v137
    %v330 = vunpack.c.l.b16 %v138
    %v331 = vunpack.c.l.b16 %v139
    %v332 = vunpack.c.l.b16 %v140
    %v333 = vunpack.c.l.b16 %v141
    %v334 = vunpack.c.l.b16 %v142
    %v335 = vunpack.c.l.b16 %v143
    %v336 = vunpack.c.l.b16 %v144
    %v337 = vunpack.c.l.b16 %v145
    %v338 = vunpack.c.l.b16 %v146
    %v339 = vunpack.c.l.b16 %v147
    %v340 = vunpack.c.l.b16 %v148
    %v341 = vunpack.c.l.b16 %v149
    %v342 = vunpack.c.l.b16 %v150
    %v343 = vunpack.c.l.b16 %v151
    %v344 = vunpack.c.l.b16 %v152
    %v345 = vunpack.c.l.b16 %v153
    %v346 = vunpack.c.l.b16 %v154
    %v347 = vunpack.c.l.b16 %v155
    %v348 = vunpack.c.l.b16 %v156
    %v349 = vunpack.c.l.b16 %v157
    %v350 = vunpack.c.l.b16 %v158
    %v351 = vunpack.c.l.b16 %v159
    %v352 = vunpack.c.l.b16 %v160
    %v353 = vunpack.c.l.b16 %v161
    %v354 = vunpack.c.l.b16 %v162
    %v355 = vunpack.c.l.b16 %v163
    %v356 = vunpack.c.l.b16 %v164
    %v357 = vunpack.c.l.b16 %v165
    %v358 = vunpack.c.l.b16 %v166
    %v359 = vunpack.c.l.b16 %v167
    %v360 = vunpack.c.l.b16 %v168
    %v361 = vunpack.c.l.b16 %v169
    %v362 = vunpack.c.l.b16 %v170
    %v363 = vunpack.c.l.b16 %v171
    %v364 = vunpack.c.l.b16 %v172
    %v365 = vunpack.c.l.b16 %v173
    %v366 = vunpack.c.l.b16 %v174
    %v367 = vunpack.c.l.b16 %v175
    %v368 = vunpack.c.l.b16 %v176
    %v369 = vunpack.c.l.b16 %v177
    %v370 = vunpack.c.l.b16 %v178
    %v371 = vunpack.c.l.b16 %v179
    %v372 = vunpack.c.l.b16 %v180
    %v373 = vunpack.c.l.b16 %v181
    %v374 = vunpack.c.l.b16 %v182
    %v375 = vunpack.c.l.b16 %v183
    %v376 = vunpack.c.l.b16 %v184
    %v377 = vunpack.c.l.b16 %v185
    %v378 = vunpack.c.l.b16 %v186
    %v379 = vunpack.c.l.b16 %v187
    %v380 = vunpack.c.l.b16 %v188
    %v381 = vunpack.c.l.b16 %v189
    %v382 = vunpack.c.l.b16 %v190
    %v383 = vunpack.c.l.b16 %v191
    %v384 = vunpack.c.l.b16 %v192
    %v385 = vunpack.c.l.b16 %v193
    %v386 = vunpack.c.l.b16 %v194
    %v387 = vunpack.c.l.b16 %v195
    %v388 = vunpack.c.l.b16 %v196
    %v389 = vunpack.c.l.b16 %v197
    %v390 = vunpack.c.l.b16 %v198
    %v391 = vunpack.c.l.b16 %v199
    %v392 = vunpack.c.l.b16 %v200
    %v393 = vunpack.c.l.b16 %v201
    %v394 = vunpack.c.l.b16 %v202
    %v395 = vunpack.c.l.b16 %v203
    %v396 = vunpack.c.l.b16 %v204
    %v397 = vunpack.c.l.b16 %v205
    %v398 = vunpack.c.l.b16 %v206
    %v399 = vunpack.c.l.b16 %v207
    %v400 = vunpack.c.l.b16 %v208
    %v401 = vunpack.c.l.b16 %v209
    %v402 = vunpack.c.l.b16 %v210
    %v403 = vunpack.c.l.b16 %v211
    %v404 = vunpack.c.l.b16 %v212
    %v405 = vunpack.c.l.b16 %v213
    %v406 = vunpack.c.l.b16 %v214
    %v407 = vunpack.c.l.b16 %v215
    %v408 = vunpack.c.l.b16 %v216
    %v409 = vpack.c.b16 %v314, %v313
    %v410 = vpack.c.b16 %v316, %v315
    %v411 = vpack.c.b16 %v318, %v317
    %v412 = vpack.c.b16 %v320, %v319
    %v413 = vpack.c.b16 %v322, %v321
    %v414 = vpack.c.b16 %v324, %v323
    %v415 = vpack.c.b16 %v326, %v325
    %v416 = vpack.c.b16 %v328, %v327
    %v417 = vpack.c.b16 %v330, %v329
    %v418 = vpack.c.b16 %v332, %v331
    %v419 = vpack.c.b16 %v334, %v333
    %v420 = vpack.c.b16 %v336, %v335
    %v421 = vpack.c.b16 %v338, %v337
    %v422 = vpack.c.b16 %v340, %v339
    %v423 = vpack.c.b16 %v342, %v341
    %v424 = vpack.c.b16 %v344, %v343
    %v425 = vpack.c.b16 %v346, %v345
    %v426 = vpack.c.b16 %v348, %v347
    %v427 = vpack.c.b16 %v350, %v349
    %v428 = vpack.c.b16 %v352, %v351
    %v429 = vpack.c.b16 %v354, %v353
    %v430 = vpack.c.b16 %v356, %v355
    %v431 = vpack.c.b16 %v358, %v357
    %v432 = vpack.c.b16 %v360, %v359
    %v433 = vpack.c.b16 %v362, %v361
    %v434 = vpack.c.b16 %v364, %v363
    %v435 = vpack.c.b16 %v366, %v365
    %v436 = vpack.c.b16 %v368, %v367
    %v437 = vpack.c.b16 %v370, %v369
    %v438 = vpack.c.b16 %v372, %v371
    %v439 = vpack.c.b16 %v374, %v373
    %v440 = vpack.c.b16 %v376, %v375
    %v441 = vpack.c.b16 %v378, %v377
    %v442 = vpack.c.b16 %v380, %v379
    %v443 = vpack.c.b16 %v382, %v381
    %v444 = vpack.c.b16 %v384, %v383
    %v445 = vpack.c.b16 %v386, %v385
    %v446 = vpack.c.b16 %v388, %v387
    %v447 = vpack.c.b16 %v390, %v389
    %v448 = vpack.c.b16 %v392, %v391
    %v449 = vpack.c.b16 %v394, %v393
    %v450 = vpack.c.b16 %v396, %v395
    %v451 = vpack.c.b16 %v398, %v397
    %v452 = vpack.c.b16 %v400, %v399
    %v453 = vpack.c.b16 %v402, %v401
    %v454 = vpack.c.b16 %v404, %v403
    %v455 = vpack.c.b16 %v406, %v405
    %v456 = vpack.c.b16 %v408, %v407
    %505 = vmatprep.subr.bf16.mxu0 0
    %506 = vmatpush1.bf16.msra.mxu0 %v409
    %507 = vmatprep.subr.bf16.mxu0 0
    %508 = vmatpush1.bf16.msra.mxu0 %v410
    %509 = vmatprep.subr.bf16.mxu0 0
    %510 = vmatpush1.bf16.msra.mxu0 %v411
    %511 = vmatprep.subr.bf16.mxu0 0
    %512 = vmatpush1.bf16.msra.mxu0 %v412
    %513 = vmatprep.subr.bf16.mxu0 0
    %514 = vmatpush1.bf16.msra.mxu0 %v413
    %515 = vmatprep.subr.bf16.mxu0 0
    %516 = vmatpush1.bf16.msra.mxu0 %v414
    %517 = vmatprep.subr.bf16.mxu0 0
    %518 = vmatpush1.bf16.msra.mxu0 %v415
    %519 = vmatprep.subr.bf16.mxu0 0
    %520 = vmatpush1.bf16.msra.mxu0 %v416
    %521 = vmatprep.subr.bf16.mxu0 0
    %522 = vmatpush1.bf16.msra.mxu0 %v417
    %523 = vmatprep.subr.bf16.mxu0 0
    %524 = vmatpush1.bf16.msra.mxu0 %v418
    %525 = vmatprep.subr.bf16.mxu0 0
    %526 = vmatpush1.bf16.msra.mxu0 %v419
    %527 = vmatprep.subr.bf16.mxu0 0
    %528 = vmatpush1.bf16.msra.mxu0 %v420
    %529 = vmatprep.subr.bf16.mxu0 0
    %530 = vmatpush1.bf16.msra.mxu0 %v421
    %531 = vmatprep.subr.bf16.mxu0 0
    %532 = vmatpush1.bf16.msra.mxu0 %v422
    %533 = vmatprep.subr.bf16.mxu0 0
    %534 = vmatpush1.bf16.msra.mxu0 %v423
    %535 = vmatprep.subr.bf16.mxu0 0
    %536 = vmatpush1.bf16.msra.mxu0 %v424
    %537 = vmatprep.mubr.bf16.mxu0 %v72
    %538 = vmatmul.mubr.bf16.gmra.mrb[0].mxu0 %v71
    %v539 = vpop.f32.mrb[0].mxu0
    %v540 = vadd.f32 0.0, %v539
    %v541 = vpop.f32.mrb[0].mxu0
    %v542 = vpop.f32.mrb[0].mxu0
    %v543 = vpop.f32.mrb[0].mxu0
    %544 = vdwg.mxu0
    %545 = vmatprep.subr.bf16.mxu0 0
    %546 = vmatpush1.bf16.msra.mxu0 %v425
    %547 = vmatprep.subr.bf16.mxu0 0
    %548 = vmatpush1.bf16.msra.mxu0 %v426
    %549 = vmatprep.subr.bf16.mxu0 0
    %550 = vmatpush1.bf16.msra.mxu0 %v427
    %551 = vmatprep.subr.bf16.mxu0 0
    %552 = vmatpush1.bf16.msra.mxu0 %v428
    %553 = vmatprep.subr.bf16.mxu0 0
    %554 = vmatpush1.bf16.msra.mxu0 %v429
    %555 = vmatprep.subr.bf16.mxu0 0
    %556 = vmatpush1.bf16.msra.mxu0 %v430
    %557 = vmatprep.subr.bf16.mxu0 0
    %558 = vmatpush1.bf16.msra.mxu0 %v431
    %559 = vmatprep.subr.bf16.mxu0 0
    %560 = vmatpush1.bf16.msra.mxu0 %v432
    %561 = vmatprep.subr.bf16.mxu0 0
    %562 = vmatpush1.bf16.msra.mxu0 %v433
    %563 = vmatprep.subr.bf16.mxu0 0
    %564 = vmatpush1.bf16.msra.mxu0 %v434
    %565 = vmatprep.subr.bf16.mxu0 0
    %566 = vmatpush1.bf16.msra.mxu0 %v435
    %567 = vmatprep.subr.bf16.mxu0 0
    %568 = vmatpush1.bf16.msra.mxu0 %v436
    %569 = vmatprep.subr.bf16.mxu0 0
    %570 = vmatpush1.bf16.msra.mxu0 %v437
    %571 = vmatprep.subr.bf16.mxu0 0
    %572 = vmatpush1.bf16.msra.mxu0 %v438
    %573 = vmatprep.subr.bf16.mxu0 0
    %574 = vmatpush1.bf16.msra.mxu0 %v439
    %575 = vmatprep.subr.bf16.mxu0 0
    %576 = vmatpush1.bf16.msra.mxu0 %v440
    %577 = vmatprep.mubr.bf16.mxu0 %v118
    %578 = vmatmul.mubr.bf16.gmra.mrb[0].mxu0 %v73
    %v579 = vpop.f32.mrb[0].mxu0
    %v580 = vadd.f32 %v540, %v579
    %v581 = vpop.f32.mrb[0].mxu0
    %v582 = vpop.f32.mrb[0].mxu0
    %v583 = vpop.f32.mrb[0].mxu0
    %584 = vdwg.mxu0
    %585 = vmatprep.subr.bf16.mxu0 0
    %586 = vmatpush1.bf16.msra.mxu0 %v441
    %587 = vmatprep.subr.bf16.mxu0 0
    %588 = vmatpush1.bf16.msra.mxu0 %v442
    %589 = vmatprep.subr.bf16.mxu0 0
    %590 = vmatpush1.bf16.msra.mxu0 %v443
    %591 = vmatprep.subr.bf16.mxu0 0
    %592 = vmatpush1.bf16.msra.mxu0 %v444
    %593 = vmatprep.subr.bf16.mxu0 0
    %594 = vmatpush1.bf16.msra.mxu0 %v445
    %595 = vmatprep.subr.bf16.mxu0 0
    %596 = vmatpush1.bf16.msra.mxu0 %v446
    %597 = vmatprep.subr.bf16.mxu0 0
    %598 = vmatpush1.bf16.msra.mxu0 %v447
    %599 = vmatprep.subr.bf16.mxu0 0
    %600 = vmatpush1.bf16.msra.mxu0 %v448
    %601 = vmatprep.subr.bf16.mxu0 0
    %602 = vmatpush1.bf16.msra.mxu0 %v449
    %603 = vmatprep.subr.bf16.mxu0 0
    %604 = vmatpush1.bf16.msra.mxu0 %v450
    %605 = vmatprep.subr.bf16.mxu0 0
    %606 = vmatpush1.bf16.msra.mxu0 %v451
    %607 = vmatprep.subr.bf16.mxu0 0
    %608 = vmatpush1.bf16.msra.mxu0 %v452
    %609 = vmatprep.subr.bf16.mxu0 0
    %610 = vmatpush1.bf16.msra.mxu0 %v453
    %611 = vmatprep.subr.bf16.mxu0 0
    %612 = vmatpush1.bf16.msra.mxu0 %v454
    %613 = vmatprep.subr.bf16.mxu0 0
    %614 = vmatpush1.bf16.msra.mxu0 %v455
    %615 = vmatprep.subr.bf16.mxu0 0
    %616 = vmatpush1.bf16.msra.mxu0 %v456
    %617 = vmatprep.mubr.bf16.mxu0 %v120
    %618 = vmatmul.mubr.bf16.gmra.mrb[0].mxu0 %v119
    %v619 = vpop.f32.mrb[0].mxu0
    %v620 = vadd.f32 %v580, %v619
    %v621 = vpop.f32.mrb[0].mxu0
    %v622 = vpop.f32.mrb[0].mxu0
    %v623 = vpop.f32.mrb[0].mxu0
    %624 = vdwg.mxu0
    %v625 = vrsqrt.pop %v620
    %v626 = vmul.f32 %v620, %v625
    %vm627 = vcmp.eq.f32.partialorder %v620, inf
    %v628 = vsel %vm627, %v620, %v626
    %vm629 = vcmp.eq.f32.partialorder %v620, 0.0
    %v630 = vand.u32 %v620, 2147483648
    %v631 = vsel %vm629, %v630, %v628
    %v632 = vsub.f32 %v631, 1.0
    %v633 = vmul.f32 %v632, %v632
    %v634 = vld [vmem:[#allocation2] sm:$0x1]
    %vm635 = vcmask 1041408
    %v636 = vsel %vm635, %v633, 0.0
    %v637 = vrot.slane %v636, 4
    %v638 = vadd.f32 %v636, %v637
    %v639 = vrot.slane %v638, 2
    %v640 = vadd.f32 %v638, %v639
    %v641 = vrot.slane %v640, 1
    %v642 = vadd.f32 %v640, %v641
    %v643 = vadd.f32 %v634, %v642
    %644 = vst [vmem:[#allocation2] sm:$0x1] %v643
    // Predicated region
    $region22: #{tpu_custom_call.1} parent=1 // pred_check
      %p645 = pneg %p44
    $region23: #{tpu_custom_call.1} parent=1 // pred_check_branch
      %647 = sbr.rel (%p645) target = $region25
    $region24: #{tpu_custom_call.1} parent=1 // pred_region
      %v648 = vld [vmem:[#allocation2] sm:$0x1]
      %vm649 = vcmask 1040384
      %v650 = vsel %vm649, %v648, 0.0
      %651 = vadd.xlane.f32.xlu0 %v650
      %v652 = vpop.xlane.xlu0 %651
      %v653 = vrot.slane %v652, 4
      %v654 = vadd.f32 %v652, %v653
      %v655 = vrot.slane %v654, 2
      %v656 = vadd.f32 %v654, %v655
      %v657 = vrot.slane %v656, 1
      %v658 = vadd.f32 %v656, %v657
      %s659 = vtos %v658
      %v660 = vstv %s659
      %vm661 = vcmask 0
      %662 = vst.msk [vmem:[#allocation8] sm:$0x1] %vm661, %v660
    $region25: #{tpu_custom_call.1} parent=1 // pred_fallthru
      _
    // Predicated region
    $region26: #{tpu_custom_call.1} parent=1 // pred_check
      _
    $region27: #{tpu_custom_call.1} parent=1 // pred_check_branch
      %664 = sbr.rel (0) target = $region29
    $region28: #{tpu_custom_call.1} parent=1 // pred_region
      %s666 = ssub.s32 16, 16
      %667 = vsyncadd [#allocation5], %s666
      %s669 = sshll.u32 [#allocation8], 4
      %s670 = int_to_ptr.vmem [resolvable:$true] %s669
      %672 = dma.vmem_to_hbm [thread:$0]  %s670, 16, %s2, [#allocation5]
    $region29: #{tpu_custom_call.1} parent=1 // pred_fallthru
      _
    // Predicated region
    $region30: #{tpu_custom_call.1} parent=1 // pred_check
      _
    $region31: #{tpu_custom_call.1} parent=1 // pred_check_branch
      %674 = sbr.rel (0) target = $region33
    $region32: #{tpu_custom_call.1} parent=1 // pred_region
      %675 = dma.done [#allocation5], 16
    $region33: #{tpu_custom_call.1} parent=1 // pred_fallthru
      _
    %676 = vsyncpa [#allocation4], 1
    %677 = vsyncpa [#allocation7], 1
    %678 = vsyncpa [#allocation5], 1

</llo_original>
